<compile_context>
chip_gen: v7x
topology: tpu7x:2x2x1
jax: 0.10.0
libtpu: 0.0.40
codegen_flags: <defaults>
</compile_context>

<pallas_src>
import functools
import math

import jax
import jax.numpy as jnp
from jax.experimental import pallas as pl
from jax.experimental.pallas import tpu as pltpu

_LANE = 128
_STEP_BUDGET = 8 * 1024 * 1024   # bytes of VMEM blocks per grid step (x2 double-buffered)
_MIN_GRID_STEPS = 4              # >=2 steps per TensorCore on v7x's 2 TCs


def _sublane(itemsize: int) -> int:
    # Sublane packing multiple: 8 rows/vreg for 4-byte, 16 for bf16, 32 for int8.
    return 8 * max(1, 4 // itemsize)


def _vmem_limit(step_bytes: int) -> int:
    # 2x headroom over the double-buffered footprint; >=32 MiB (covers v5e's
    # 16 MiB default scoped limit), capped under v7x's 64 MiB physical VMEM.
    return int(min(56 * 1024 * 1024, max(32 * 1024 * 1024, 4 * step_bytes)))


def _row_tile(rows: int, bytes_per_row: int, sublane: int, col_steps: int) -> int:
    """Largest sublane-aligned row tile inside the per-step budget, capped so the
    total grid has >= _MIN_GRID_STEPS steps whenever `rows` allows it."""
    tm = max(sublane, (_STEP_BUDGET // max(1, bytes_per_row)) // sublane * sublane)
    if col_steps < _MIN_GRID_STEPS:
        want_r = -(-_MIN_GRID_STEPS // col_steps)          # ceil
        if rows >= want_r * sublane:
            tm = min(tm, max(sublane, (rows // want_r) // sublane * sublane))
    if rows <= tm:
        return rows                                        # full-extent block is always legal
    return tm


# ----------------------------------------------------------------------------
# Fast path: pure-DMA crop (HBM -> output VMEM block), no vector ops.
# ----------------------------------------------------------------------------
def _crop_dma_kernel(x_hbm, o_ref, sem, *, tm, tn, psize, rows, out_len):
    i = pl.program_id(0)          # row-block index
    j = pl.program_id(1)          # col-block index (usually a single block)

    n_full_r, row_tail = divmod(rows, tm)
    n_full_c, col_tail = divmod(out_len, tn)

    def issue(rsz, csz):
        src = x_hbm.at[pl.ds(i * tm, rsz), pl.ds(psize + j * tn, csz)]
        if rsz == tm and csz == tn:
            dst = o_ref
        else:
            dst = o_ref.at[pl.ds(0, rsz), pl.ds(0, csz)]
        cp = pltpu.make_async_copy(src, dst, sem)
        cp.start()
        cp.wait()

    # Static edge-block cases: each grid step matches exactly one combination.
    row_cases = []
    if n_full_r > 0:
        row_cases.append((i < n_full_r, tm))
    if row_tail > 0:
        row_cases.append((i == n_full_r, row_tail))
    col_cases = []
    if n_full_c > 0:
        col_cases.append((j < n_full_c, tn))
    if col_tail > 0:
        col_cases.append((j == n_full_c, col_tail))

    if len(row_cases) == 1 and len(col_cases) == 1:
        issue(row_cases[0][1], col_cases[0][1])
    else:
        for rpred, rsz in row_cases:
            for cpred, csz in col_cases:
                @pl.when(jnp.logical_and(rpred, cpred))
                def _(rsz=rsz, csz=csz):
                    issue(rsz, csz)


def _remove_padding_dma(x2d, psize, out_len, itemsize, sublane, tile_rows, tile_cols):
    rows, L = x2d.shape

    # Column tile: full out_len unless even a minimum-height block overflows
    # the budget (very long rows) -- then tile the lane axis in 128-multiples.
    if sublane * out_len * itemsize <= _STEP_BUDGET:
        tn = out_len
    else:
        tn = max(_LANE, (_STEP_BUDGET // (sublane * itemsize)) // _LANE * _LANE)
    if tile_cols is not None:
        t = int(tile_cols)
        tn = out_len if t >= out_len else max(_LANE, (t // _LANE) * _LANE)
    gc = pl.cdiv(out_len, tn)

    tm = _row_tile(rows, tn * itemsize, sublane, gc)
    if tile_rows is not None:
        t = int(tile_rows)
        tm = rows if t >= rows else max(sublane, (t // sublane) * sublane)
    gr = pl.cdiv(rows, tm)

    kernel = functools.partial(_crop_dma_kernel, tm=tm, tn=tn, psize=psize,
                               rows=rows, out_len=out_len)
    step_bytes = tm * tn * itemsize

    return pl.pallas_call(
        kernel,
        out_shape=jax.ShapeDtypeStruct((rows, out_len), x2d.dtype),
        grid_spec=pltpu.PrefetchScalarGridSpec(
            num_scalar_prefetch=0,
            grid=(gr, gc),
            in_specs=[pl.BlockSpec(memory_space=pl.ANY)],   # stay in HBM; DMA crops columns
            out_specs=pl.BlockSpec((tm, tn), lambda i, j: (i, j)),
            scratch_shapes=[pltpu.SemaphoreType.DMA],
        ),
        compiler_params=pltpu.CompilerParams(
            dimension_semantics=("parallel", "arbitrary"),
            vmem_limit_bytes=_vmem_limit(step_bytes)),
        cost_estimate=pl.CostEstimate(
            flops=0, transcendentals=0,
            bytes_accessed=2 * rows * out_len * itemsize),
    )(x2d)


# ----------------------------------------------------------------------------
# Fallback path: full-row blocks + static lane-axis crop in VMEM.
# ----------------------------------------------------------------------------
def _crop_vreg_kernel(x_ref, o_ref, *, psize, out_len):
    o_ref[...] = x_ref[:, psize:psize + out_len]


def _remove_padding_vreg(x2d, psize, out_len, itemsize, sublane, tile_rows):
    rows, L = x2d.shape
    tm = _row_tile(rows, (L + out_len) * itemsize, sublane, 1)
    if tile_rows is not None:
        t = int(tile_rows)
        tm = rows if t >= rows else max(sublane, (t // sublane) * sublane)
    gr = pl.cdiv(rows, tm)

    kernel = functools.partial(_crop_vreg_kernel, psize=psize, out_len=out_len)
    step_bytes = tm * (L + out_len) * itemsize

    return pl.pallas_call(
        kernel,
        out_shape=jax.ShapeDtypeStruct((rows, out_len), x2d.dtype),
        grid_spec=pltpu.PrefetchScalarGridSpec(
            num_scalar_prefetch=0,
            grid=(gr,),
            in_specs=[pl.BlockSpec((tm, L), lambda i: (i, 0))],
            out_specs=pl.BlockSpec((tm, out_len), lambda i: (i, 0)),
        ),
        compiler_params=pltpu.CompilerParams(
            dimension_semantics=("parallel",),
            vmem_limit_bytes=_vmem_limit(step_bytes)),
        cost_estimate=pl.CostEstimate(
            flops=0, transcendentals=0,
            bytes_accessed=rows * (L + out_len) * itemsize),
    )(x2d)


# ----------------------------------------------------------------------------
# Public wrapper.
# ----------------------------------------------------------------------------
def remove_padding(x: jax.Array, padding_size: int, *,
                   tile_rows=None, tile_cols=None) -> jax.Array:
    """Pallas equivalent of RemovePadding(padding_size)(x): x[..., p:-p]."""
    psize = int(padding_size)
    assert psize >= 0
    *lead, L = x.shape
    if psize == 0:
        # Literal torch semantics: X[..., 0:-0] == X[..., 0:0] (empty last dim).
        return x[..., 0:0]
    out_len = L - 2 * psize
    assert out_len > 0, "padding removes everything"

    rows = math.prod(lead) if lead else 1
    if rows == 0:
        return x[..., psize:psize + out_len]

    x2d = x.reshape(rows, L)                       # layout-preserving glue reshape
    itemsize = jnp.dtype(x.dtype).itemsize
    sublane = _sublane(itemsize)

    # Path selection (static):
    #   * DMA crop needs the crop byte-offset 32-bit aligned (conservative).
    #   * Tiny out_len with tiny padding: contiguous full-row reads beat
    #     sub-512 B strided DMA chunks (review caveat).
    aligned = (psize * itemsize) % 4 == 0
    tiny_chunks = (out_len * itemsize < 512) and (2 * psize * itemsize < 256)
    if aligned and not tiny_chunks:
        out2d = _remove_padding_dma(x2d, psize, out_len, itemsize, sublane,
                                    tile_rows, tile_cols)
    else:
        out2d = _remove_padding_vreg(x2d, psize, out_len, itemsize, sublane,
                                     tile_rows)
    return out2d.reshape(*lead, out_len)


if __name__ == "__main__":
    keys = jax.random.split(jax.random.PRNGKey(0), 5)

    # Test 1: NCHW-style tensor (tiny out_len + tiny padding -> full-row path).
    x1 = jax.random.normal(keys[0], (2, 4, 16, 16), dtype=jnp.float32)
    y1 = jax.block_until_ready(remove_padding(x1, 2))
    assert y1.shape == (2, 4, 16, 12), y1.shape
    assert jnp.array_equal(y1, x1[..., 2:-2]), "mismatch (test 1)"

    # Test 2: full-row path, multi-step grid with a partial edge row block.
    x2 = jax.random.normal(keys[1], (2, 4, 60, 16), dtype=jnp.float32)
    y2 = jax.block_until_ready(remove_padding(x2, 2, tile_rows=64))
    assert y2.shape == (2, 4, 60, 12), y2.shape
    assert jnp.array_equal(y2, x2[..., 2:-2]), "mismatch (test 2)"

    # Test 3: bf16 with an odd (unaligned) crop offset -> full-row path.
    x3 = jax.random.normal(keys[2], (3, 5, 24), dtype=jnp.bfloat16)
    y3 = jax.block_until_ready(remove_padding(x3, 3))
    assert y3.shape == (3, 5, 18), y3.shape
    assert jnp.array_equal(y3, x3[..., 3:-3]), "mismatch (test 3)"

    # Test 4: DMA-crop path with forced row AND lane tiling (all edge cases).
    x4 = jax.random.normal(keys[3], (2, 4, 8, 328), dtype=jnp.float32)
    y4 = jax.block_until_ready(remove_padding(x4, 16, tile_rows=40, tile_cols=128))
    assert y4.shape == (2, 4, 8, 296), y4.shape
    assert jnp.array_equal(y4, x4[..., 16:-16]), "mismatch (test 4)"

    # Test 5: DMA-crop path with automatic tiling (multi-step row grid).
    x5 = jax.random.normal(keys[4], (8, 64, 512), dtype=jnp.float32)
    y5 = jax.block_until_ready(remove_padding(x5, 64))
    assert y5.shape == (8, 64, 384), y5.shape
    assert jnp.array_equal(y5, x5[..., 64:-64]), "mismatch (test 5)"

    print("KERNEL_OK")
</pallas_src>

<mosaic_0001>
module attributes {stable_mosaic.version = 11 : i64} {
  func.func @_crop_vreg_kernel(%arg0: i32, %arg1: memref<32x16xf32, #tpu.memory_space<vmem>>, %arg2: memref<32x12xf32, #tpu.memory_space<vmem>>) attributes {dimension_semantics = [#tpu.dimension_semantics<parallel>], iteration_bounds = array<i64: 4>, scalar_prefetch = 0 : i64, scratch_operands = 0 : i64, tpu.core_type = #tpu.core_type<tc>, window_params = [{transform_indices = @transform_0, window_bounds = array<i64: 32, 16>}, {transform_indices = @transform_1, window_bounds = array<i64: 32, 12>}]} {
    %c0 = arith.constant 0 : index
    %c2 = arith.constant 2 : index
    %0 = vector.load %arg1[%c0, %c2] : memref<32x16xf32, #tpu.memory_space<vmem>>, vector<32x12xf32>
    %c0_0 = arith.constant 0 : index
    %c0_1 = arith.constant 0 : index
    %1 = vector.load %arg2[%c0_0, %c0_1] : memref<32x12xf32, #tpu.memory_space<vmem>>, vector<32x12xf32>
    tpu.vector_store %arg2[%c0_0, %c0_1], %0 {strides = array<i32>} : memref<32x12xf32, #tpu.memory_space<vmem>>, vector<32x12xf32>,
    return
  }
  func.func @transform_0(%arg0: i32) -> (i32, i32) {
    %c0_i32 = arith.constant 0 : i32
    %c0_i32_0 = arith.constant 0 : i32
    return %arg0, %c0_i32 : i32, i32
  }
  func.func @transform_1(%arg0: i32) -> (i32, i32) {
    %c0_i32 = arith.constant 0 : i32
    %c0_i32_0 = arith.constant 0 : i32
    return %arg0, %c0_i32 : i32, i32
  }
}

</mosaic_0001>

<llo_original>
// kernel: tpu_custom_call.1
$region0: #{tpu_custom_call.1}
  #allocation0 [shape = 'u32[]', space=smem, size = 0x4, offset = 0x4, fixed_abs, tag = 'smem constant byte address 0x4 - core index']
  #allocation1 [shape = 'u32[144,128]{1,0:T(1,128)}', space=vmem, size = 0x12000, scoped, tag = 'internal scratch']
  %s0 = inlined_call_operand.vmem [shape: f32[128,16], index: 0, kind: input, shape index: {}]
  %s1 = inlined_call_operand.vmem [shape: f32[128,12], index: 1, kind: output, shape index: {}]
  %s2 = sld [smem:[#allocation0]]
  $region37: #{tpu_custom_call.1} parent=0
    _
  %s4 = ssub.s32 1, %s2
  %s5 = scalar_select 0, %s4, %s2
  loop: start=0, step=1, limit=6
  $region2: #{tpu_custom_call.1} parent=0 // loop_pre_header
    _
  $region3: #{tpu_custom_call.1} parent=0 // loop_header
    %s7 = sphi 0, %s11
    %p8 = scmp.ge.s32.totalorder %s7, 6
    %s17 = sphi 0, %s19
    %s20 = sphi 0, %s17
    %s21 = sphi 0, %s20
    %s37 = sphi 0, %s21
    %s43 = sphi 0, %s45
    %s46 = sphi 0, %s43
    %s47 = sphi 0, %s46
    %s63 = sphi 0, %s47
  $region4: #{tpu_custom_call.1} parent=0 // loop_header_branch
    %10 = sbr.rel (%p8) target = $region8
  $region5: #{tpu_custom_call.1} parent=0 // loop_body
    %s12 = ssub.s32 %s7, 1
    %s13 = ssub.s32 %s7, 2
    %s14 = sadd.s32 %s7, 1
    %s15 = ssub.s32 %s7, %s14
    %p16 = scmp.eq.s32.totalorder %s15, 0
    %s18 = sadd.s32 %s17, 1
    %s19 = scalar_select %p16, %s17, %s18
    %p22 = pneg %p16
    %p23 = scmp.eq.s32.totalorder %s7, 3
    %p24 = por %p22, %p23
    %p25 = scmp.ne.s32.totalorder %s17, %s20
    %p26 = scmp.eq.s32.totalorder %s7, 0
    %p27 = por %p25, %p26
    %p28 = scmp.ne.s32.totalorder %s17, %s20
    %p29 = scmp.eq.s32.totalorder %s12, 3
    %p30 = por %p28, %p29
    %p31 = scmp.ne.s32.totalorder %s20, %s21
    %p32 = scmp.eq.s32.totalorder %s12, 0
    %p33 = por %p31, %p32
    %p34 = scmp.ne.s32.totalorder %s20, %s21
    %p35 = scmp.eq.s32.totalorder %s13, 3
    %p36 = por %p34, %p35
    %p38 = scmp.ne.s32.totalorder %s21, %s37
    %p39 = scmp.eq.s32.totalorder %s13, 0
    %p40 = por %p38, %p39
    %s41 = ssub.s32 %s7, %s14
    %p42 = scmp.eq.s32.totalorder %s41, 0
    %s44 = sadd.s32 %s43, 1
    %s45 = scalar_select %p42, %s43, %s44
    %p48 = pneg %p42
    %p49 = scmp.eq.s32.totalorder %s7, 3
    %p50 = por %p48, %p49
    %p51 = scmp.ne.s32.totalorder %s43, %s46
    %p52 = scmp.eq.s32.totalorder %s7, 0
    %p53 = por %p51, %p52
    %p54 = scmp.ne.s32.totalorder %s43, %s46
    %p55 = scmp.eq.s32.totalorder %s12, 3
    %p56 = por %p54, %p55
    %p57 = scmp.ne.s32.totalorder %s46, %s47
    %p58 = scmp.eq.s32.totalorder %s12, 0
    %p59 = por %p57, %p58
    %p60 = scmp.ne.s32.totalorder %s46, %s47
    %p61 = scmp.eq.s32.totalorder %s13, 3
    %p62 = por %p60, %p61
    %p64 = scmp.ne.s32.totalorder %s47, %s63
    %p65 = scmp.eq.s32.totalorder %s13, 0
    %p66 = por %p64, %p65
    %p67 = scmp.le.s32.totalorder 1, %s7
    %p68 = scmp.lt.s32.totalorder %s7, 5
    %p69 = pnand %p67, %p68
    %p70 = pneg %p69
    // Predicated region
    $region9: #{tpu_custom_call.1} parent=5 // pred_check
      _
    $region10: #{tpu_custom_call.1} parent=5 // pred_check_branch
      %72 = sbr.rel (%p69) target = $region12
    $region11: #{tpu_custom_call.1} parent=5 // pred_region
      %s73 = ssub.s32 %s7, 1
    $region12: #{tpu_custom_call.1} parent=5 // pred_fallthru
      _
    %p74 = scmp.lt.s32.totalorder %s7, 4
    // Predicated region
    $region13: #{tpu_custom_call.1} parent=5 // pred_check
      %p75 = pneg %p74
    $region14: #{tpu_custom_call.1} parent=5 // pred_check_branch
      %77 = sbr.rel (%p75) target = $region16
    $region15: #{tpu_custom_call.1} parent=5 // pred_region
      // Predicated region
      $region17: #{tpu_custom_call.1} parent=15 // pred_check
        %p78 = pneg %p27
      $region18: #{tpu_custom_call.1} parent=15 // pred_check_branch
        %80 = sbr.rel (%p78) target = $region20
      $region19: #{tpu_custom_call.1} parent=15 // pred_region
        %s81 = smul.u32 4, %s7
        %p82 = scmp.lt.s32.totalorder %s81, 15
        %s83 = scalar_select %p82, %s81, 15
        %s84 = smul.addr %s83, 8
        %s85 = scalar_lea.vmem %s0, %s84
        %s86 = smul.u32 4, %s7
      $region20: #{tpu_custom_call.1} parent=15 // pred_fallthru
        _
    $region16: #{tpu_custom_call.1} parent=5 // pred_fallthru
      _
    %p87 = scmp.le.s32.totalorder 1, %s7
    %p88 = scmp.lt.s32.totalorder %s7, 5
    %p89 = pnand %p87, %p88
    %p90 = pneg %p89
    // Predicated region
    $region21: #{tpu_custom_call.1} parent=5 // pred_check
      _
    $region22: #{tpu_custom_call.1} parent=5 // pred_check_branch
      %92 = sbr.rel (%p89) target = $region24
    $region23: #{tpu_custom_call.1} parent=5 // pred_region
      %s93 = ssub.s32 %s7, 1
      %s94 = smul.u32 4, %s12
      %p95 = scmp.lt.s32.totalorder %s94, 15
      %s96 = scalar_select %p95, %s94, 15
      %s97 = smul.addr %s96, 8
      %s98 = scalar_lea.vmem %s0, %s97
      %p99 = pneg %p33
      %p100 = pneg %p30
      %p101 = pneg %p59
      %p102 = pneg %p56
      %s103 = smul.u32 4, %s12
      %p104 = scmp.lt.s32.totalorder %s103, 15
      %s105 = scalar_select %p104, %s103, 15
      %s106 = smul.addr %s105, 8
      %s107 = scalar_lea.vmem %s1, %s106
      %s108 = smul.u32 4, %s12
      %p109 = scmp.lt.s32.totalorder %s108, 15
      %s110 = scalar_select %p109, %s108, 15
      %s111 = smul.addr %s110, 8
      %s112 = scalar_lea.vmem %s0, %s111
      %s113 = smul.u32 4, %s12
      %s114 = smul.u32 4, %s12
      %p115 = scmp.lt.s32.totalorder %s114, 15
      %s116 = scalar_select %p115, %s114, 15
      %s117 = smul.addr %s116, 8
      %s118 = scalar_lea.vmem %s1, %s117
      %s119 = smul.u32 4, %s12
      %v120 = vld [vmem:[%s112] sm:$0xff]
      %v121 = vld [vmem:[%s112 + $0x8] sm:$0xff]
      %v122 = vld [vmem:[%s112 + $0x10] sm:$0xff]
      %v123 = vld [vmem:[%s112 + $0x18] sm:$0xff]
      %128 = vrot.lane.b32.xlu0 %v120, 126
      %v129 = vpop.permute.xlu0 %128
      %130 = vrot.lane.b32.xlu0 %v121, 126
      %v131 = vpop.permute.xlu0 %130
      %132 = vrot.lane.b32.xlu0 %v122, 126
      %v133 = vpop.permute.xlu0 %132
      %134 = vrot.lane.b32.xlu0 %v123, 126
      %v135 = vpop.permute.xlu0 %134
      %vm140 = vcmask 97280
      %141 = vst.msk [vmem:[%s118] sm:$0xff] %vm140, %v129
      %142 = vst.msk [vmem:[%s118 + $0x8] sm:$0xff] %vm140, %v131
      %143 = vst.msk [vmem:[%s118 + $0x10] sm:$0xff] %vm140, %v133
      %144 = vst.msk [vmem:[%s118 + $0x18] sm:$0xff] %vm140, %v135
      %s145 = smul.u32 4, %s12
      %p146 = scmp.lt.s32.totalorder %s145, 15
      %s147 = scalar_select %p146, %s145, 15
      %s148 = smul.addr %s147, 8
      %s149 = scalar_lea.vmem %s1, %s148
      // Predicated region
      $region25: #{tpu_custom_call.1} parent=23 // pred_check
        %p150 = pneg %p56
      $region26: #{tpu_custom_call.1} parent=23 // pred_check_branch
        %152 = sbr.rel (%p150) target = $region28
      $region27: #{tpu_custom_call.1} parent=23 // pred_region
        %s153 = smul.u32 4, %s12
      $region28: #{tpu_custom_call.1} parent=23 // pred_fallthru
        _
    $region24: #{tpu_custom_call.1} parent=5 // pred_fallthru
      _
    %p154 = scmp.le.s32.totalorder 2, %s7
    // Predicated region
    $region29: #{tpu_custom_call.1} parent=5 // pred_check
      %p155 = pneg %p154
    $region30: #{tpu_custom_call.1} parent=5 // pred_check_branch
      %157 = sbr.rel (%p155) target = $region32
    $region31: #{tpu_custom_call.1} parent=5 // pred_region
      %s158 = ssub.s32 %s7, 2
      // Predicated region
      $region33: #{tpu_custom_call.1} parent=31 // pred_check
        %p159 = pneg %p62
      $region34: #{tpu_custom_call.1} parent=31 // pred_check_branch
        %161 = sbr.rel (%p159) target = $region36
      $region35: #{tpu_custom_call.1} parent=31 // pred_region
        %s162 = smul.u32 4, %s13
        %p163 = scmp.lt.s32.totalorder %s162, 15
        %s164 = scalar_select %p163, %s162, 15
        %s165 = smul.addr %s164, 8
        %s166 = scalar_lea.vmem %s1, %s165
      $region36: #{tpu_custom_call.1} parent=31 // pred_fallthru
        _
    $region32: #{tpu_custom_call.1} parent=5 // pred_fallthru
      _
  $region6: #{tpu_custom_call.1} parent=0 // loop_footer
    %s11 = sadd.s32 1, %s7
  $region7: #{tpu_custom_call.1} parent=0 // loop_footer_branch
    %6 = sbr.rel target = $region3
  $region8: #{tpu_custom_call.1} parent=0 // loop_exit
    _

</llo_original>
